<compile_context>
chip_gen: v5e
topology: v5e:2x2
jax: 0.10.0
libtpu: 0.0.40
codegen_flags: <defaults>
</compile_context>

<pallas_src>
import functools

import jax
import jax.numpy as jnp
import numpy as np
from jax.experimental import pallas as pl
from jax.experimental.pallas import tpu as pltpu


def _round_up(x, m):
    return ((x + m - 1) // m) * m


def _cdiv(a, b):
    return (a + b - 1) // b


def _make_probe_kernel(d_valid, block_d, needs_mask):
    """Build the kernel with trace-time constants baked in."""

    def kernel(x_ref, w_ref, b_ref, o_ref, acc_ref):
        # x_ref: (TB, TD)   w_ref: (1, TD)   b_ref: (1,1) SMEM   o_ref: (1, 1, TB)
        # acc_ref: (1, TB) f32 scratch (persists across the D-reduction axis)
        k = pl.program_id(1)

        @pl.when(k == 0)
        def _init():
            acc_ref[...] = jnp.zeros_like(acc_ref)

        x = x_ref[...]
        if needs_mask:
            # Ragged last D block: zero out columns beyond the true feature dim so
            # undefined OOB reads (possibly NaN) cannot contaminate the reduction.
            col = jax.lax.broadcasted_iota(jnp.int32, x.shape, 1) + k * block_d
            x = jnp.where(col < d_valid, x, jnp.zeros_like(x))

        # (1, TD) x (TB, TD) contracted over TD -> (1, TB); MXU with f32 accumulation.
        acc_ref[...] += jax.lax.dot_general(
            w_ref[...], x,
            dimension_numbers=(((1,), (1,)), ((), ())),
            preferred_element_type=jnp.float32)

        @pl.when(k == pl.num_programs(1) - 1)
        def _finalize():
            o_ref[0] = (acc_ref[...] + b_ref[0, 0]).astype(o_ref.dtype)

    return kernel


def probe_forward(x, weight, bias, *, block_b=None, block_d=None):
    """Pallas implementation of InterpretabilityBinaryProbe.forward.

    x:      (B, D) float32 or bfloat16 activations
    weight: (1, D) or (D,) probe direction (nn.Linear(D, 1).weight layout)
    bias:   ()     bias term
    returns (B,)   float32 logits
    """
    B, D = x.shape
    x_dtype = x.dtype
    itemsize = jnp.dtype(x_dtype).itemsize
    sublane = {4: 8, 2: 16, 1: 32}.get(itemsize, 8)

    # Weight matches the MXU input dtype (no per-step cast, half-size residency for
    # bf16); bias lives in SMEM as an f32 scalar.
    weight = jnp.reshape(weight, (1, D)).astype(x_dtype)
    bias2d = jnp.reshape(bias, (1, 1)).astype(jnp.float32)

    # ~16 MiB per x tile (double-buffered ~32 MiB): near HBM roofline on v5e/v6e,
    # safe on v7x's 64 MiB VMEM since there is no in-kernel f32 tile copy anymore.
    target_bytes = 16 * 1024 * 1024

    # ---- Feature (D) tiling: only when one sublane-height row block overflows budget.
    if block_d is None:
        if sublane * D * itemsize > target_bytes:
            block_d = max(128, (target_bytes // (sublane * itemsize)) // 128 * 128)
        else:
            block_d = D
    block_d = int(block_d)
    if block_d >= D:
        block_d = D
    else:
        block_d = max(128, (block_d // 128) * 128)   # lane multiple when tiling D
    num_d = _cdiv(D, block_d)
    needs_mask = (num_d > 1) and (D % block_d != 0)
    if num_d > 1 and D % block_d != 0:
        # Pad only the tiny (1, D) weight so every weight block is in-bounds.
        weight = jnp.pad(weight, ((0, 0), (0, num_d * block_d - D)))

    # ---- Batch (B) tiling: size by bytes (no row cap), dtype-correct sublane round.
    if block_b is None:
        block_b = target_bytes // max(block_d * itemsize, 1)
    block_b = max(sublane, (int(block_b) // sublane) * sublane)
    block_b = min(block_b, _round_up(B, sublane))
    num_b = _cdiv(B, block_b)

    # Explicit VMEM budget from padded layouts: double-buffered x and w tiles,
    # double-buffered lane-dense output, accumulator, plus slack.
    def _lane(n):
        return _round_up(n, 128)

    x_tile = block_b * _lane(block_d) * itemsize
    w_tile = 8 * _lane(block_d) * itemsize
    o_tile = 8 * _lane(block_b) * 4
    vmem_limit = int(min(max(2 * x_tile + 2 * w_tile + 3 * o_tile + (2 << 20), 8 << 20),
                         56 << 20))

    kernel = _make_probe_kernel(D, block_d, needs_mask)

    out = pl.pallas_call(
        kernel,
        out_shape=jax.ShapeDtypeStruct((num_b, 1, block_b), jnp.float32),
        grid_spec=pltpu.PrefetchScalarGridSpec(
            num_scalar_prefetch=0,
            grid=(num_b, num_d),
            in_specs=[
                pl.BlockSpec((block_b, block_d), lambda i, k: (i, k)),  # activations
                pl.BlockSpec((1, block_d), lambda i, k: (0, k)),        # probe direction
                pl.BlockSpec(memory_space=pltpu.SMEM),                  # bias scalar
            ],
            out_specs=pl.BlockSpec((1, 1, block_b), lambda i, k: (i, 0, 0)),
            scratch_shapes=[pltpu.VMEM((1, block_b), jnp.float32)],     # f32 accumulator
        ),
        compiler_params=pltpu.CompilerParams(
            dimension_semantics=("parallel", "arbitrary"),
            vmem_limit_bytes=vmem_limit,
        ),
    )(x, weight, bias2d)

    # (num_b, 1, block_b) -> flat logits; drop ragged-tile tail -> (B,)  (squeeze(-1))
    return out.reshape(num_b * block_b)[:B]


def probe_forward_auto(x, weight, bias, *, block_b=None, block_d=None,
                       min_bytes=2 << 20):
    """Dispatch: sub-~2MiB activations go through a fused XLA GEMV (pallas_call
    fixed overhead dominates below that); larger batched scoring uses the kernel."""
    B, D = x.shape
    if B * D * jnp.dtype(x.dtype).itemsize < min_bytes:
        w = jnp.reshape(weight, (1, D)).astype(jnp.float32)
        return (jnp.einsum("bd,od->bo", x.astype(jnp.float32), w)[:, 0]
                + jnp.asarray(bias, jnp.float32))
    return probe_forward(x, weight, bias, block_b=block_b, block_d=block_d)


def probe_predict_proba(x, weight, bias, *, block_b=None, block_d=None):
    return jax.nn.sigmoid(probe_forward(x, weight, bias,
                                        block_b=block_b, block_d=block_d))


if __name__ == "__main__":
    key = jax.random.PRNGKey(0)
    B, D = 64, 32  # small shapes; block_b=16 exercises a 4-step pipelined batch grid

    kx, kw, kx2, kw2 = jax.random.split(key, 4)
    x = jax.random.normal(kx, (B, D), dtype=jnp.float32)

    # __init__ zero-initializes weight and bias; also exercise a nonzero direction
    # (as set via set_direction) so the check is non-trivial.
    weight_zero = jnp.zeros((1, D), dtype=jnp.float32)
    bias_zero = jnp.zeros((), dtype=jnp.float32)
    direction = jax.random.normal(kw, (1, D), dtype=jnp.float32) * 0.1
    bias_val = jnp.float32(0.25)

    # 1) zero-init case (matches nn.Module __init__ exactly), multi-tile batch grid.
    logits0 = jax.block_until_ready(probe_forward(x, weight_zero, bias_zero, block_b=16))
    # 2) nonzero probe direction, multi-tile batch grid.
    logits1 = jax.block_until_ready(probe_forward(x, direction, bias_val, block_b=16))
    # 3) auto-sized tile (single block for this tiny batch).
    logits2 = jax.block_until_ready(probe_forward(x, direction, bias_val))
    # 4) bf16 activations path (weight pre-cast to bf16; f32 MXU accumulation).
    x_bf16 = x.astype(jnp.bfloat16)
    logits3 = jax.block_until_ready(probe_forward(x_bf16, direction, bias_val, block_b=16))
    # 5) non-multiple-of-tile batch (ragged last batch block, no host-side padding).
    logits4 = jax.block_until_ready(probe_forward(x[:37], direction, bias_val, block_b=16))
    # 6) feature-tiled reduction path with ragged last D block (masking + weight pad).
    x2 = jax.random.normal(kx2, (48, 300), dtype=jnp.float32)
    direction2 = jax.random.normal(kw2, (1, 300), dtype=jnp.float32) * 0.05
    logits5 = jax.block_until_ready(
        probe_forward(x2, direction2, bias_val, block_b=16, block_d=128))

    # References (plain JAX).
    ref0 = (x @ weight_zero.T).squeeze(-1) + bias_zero
    ref1 = (x @ direction.T).squeeze(-1) + bias_val
    dir_bf16 = direction.astype(jnp.bfloat16).astype(jnp.float32)
    ref3 = (x_bf16.astype(jnp.float32) @ dir_bf16.T).squeeze(-1) + bias_val
    ref4 = ref1[:37]
    ref5 = (x2 @ direction2.T).squeeze(-1) + bias_val

    assert logits0.shape == (B,)
    assert logits1.shape == (B,)
    assert logits4.shape == (37,)
    assert logits5.shape == (48,)
    np.testing.assert_allclose(np.asarray(logits0), np.asarray(ref0), rtol=1e-5, atol=1e-5)
    np.testing.assert_allclose(np.asarray(logits1), np.asarray(ref1), rtol=1e-5, atol=1e-5)
    np.testing.assert_allclose(np.asarray(logits2), np.asarray(ref1), rtol=1e-5, atol=1e-5)
    np.testing.assert_allclose(np.asarray(logits3), np.asarray(ref3), rtol=1e-4, atol=1e-4)
    np.testing.assert_allclose(np.asarray(logits4), np.asarray(ref4), rtol=1e-5, atol=1e-5)
    np.testing.assert_allclose(np.asarray(logits5), np.asarray(ref5), rtol=1e-4, atol=1e-4)

    # predict_proba path (sigmoid applied outside the kernel, matching the module).
    probs = jax.block_until_ready(probe_predict_proba(x, direction, bias_val, block_b=16))
    np.testing.assert_allclose(np.asarray(probs),
                               np.asarray(jax.nn.sigmoid(ref1)), rtol=1e-5, atol=1e-5)

    # Tiny-shape dispatcher (pure-XLA fast path below the overhead crossover).
    small = jax.block_until_ready(probe_forward_auto(x[:8], direction, bias_val))
    np.testing.assert_allclose(np.asarray(small), np.asarray(ref1[:8]), rtol=1e-5, atol=1e-5)

    print("KERNEL_OK")
</pallas_src>

<mosaic_0001>
module attributes {stable_mosaic.version = 11 : i64} {
  func.func @kernel(%arg0: i32, %arg1: i32, %arg2: memref<16x32xf32, #tpu.memory_space<vmem>>, %arg3: memref<1x32xf32, #tpu.memory_space<vmem>>, %arg4: memref<1x1xf32, #tpu.memory_space<smem>>, %arg5: memref<1x1x16xf32, #tpu.memory_space<vmem>>, %arg6: memref<1x16xf32, #tpu.memory_space<vmem>>) attributes {dimension_semantics = [#tpu.dimension_semantics<parallel>, #tpu.dimension_semantics<arbitrary>], iteration_bounds = array<i64: 4, 1>, scalar_prefetch = 0 : i64, scratch_operands = 1 : i64, tpu.core_type = #tpu.core_type<tc>, window_params = [{transform_indices = @transform_0, window_bounds = array<i64: 16, 32>}, {transform_indices = @transform_1, window_bounds = array<i64: 1, 32>}, {transform_indices = @transform_2, window_bounds = array<i64: 1, 1>}, {transform_indices = @transform_3, window_bounds = array<i64: 1, 1, 16>}]} {
    %c0_i32 = arith.constant 0 : i32
    %0 = arith.cmpi eq, %arg1, %c0_i32 : i32
    %1 = arith.extui %0 : i1 to i32
    %c0_i32_0 = arith.constant 0 : i32
    %2 = arith.cmpi ne, %1, %c0_i32_0 : i32
    scf.if %2 {
      %cst_10 = arith.constant 0.000000e+00 : f32
      %12 = vector.broadcast %cst_10 : f32 to vector<1x16xf32>
      %c0_11 = arith.constant 0 : index
      %c0_12 = arith.constant 0 : index
      %13 = vector.load %arg6[%c0_11, %c0_12] : memref<1x16xf32, #tpu.memory_space<vmem>>, vector<1x16xf32>
      tpu.vector_store %arg6[%c0_11, %c0_12], %12 {strides = array<i32>} : memref<1x16xf32, #tpu.memory_space<vmem>>, vector<1x16xf32>,
    } else {
    }
    %c0 = arith.constant 0 : index
    %c0_1 = arith.constant 0 : index
    %3 = vector.load %arg2[%c0, %c0_1] : memref<16x32xf32, #tpu.memory_space<vmem>>, vector<16x32xf32>
    %c0_2 = arith.constant 0 : index
    %c0_3 = arith.constant 0 : index
    %4 = vector.load %arg6[%c0_2, %c0_3] : memref<1x16xf32, #tpu.memory_space<vmem>>, vector<1x16xf32>
    %c0_4 = arith.constant 0 : index
    %c0_5 = arith.constant 0 : index
    %5 = vector.load %arg3[%c0_4, %c0_5] : memref<1x32xf32, #tpu.memory_space<vmem>>, vector<1x32xf32>
    %cst = arith.constant dense<0.000000e+00> : vector<1x16xf32>
    %6 = tpu.matmul %5, %3, %cst {dimension_numbers = #tpu.dot_dimension_numbers<[1], [1], [0], [0], [0, 0, 1, 0], [], []>} : vector<1x32xf32>, vector<16x32xf32>, vector<1x16xf32> -> vector<1x16xf32>
    %7 = arith.addf %4, %6 : vector<1x16xf32>
    %c0_6 = arith.constant 0 : index
    %c0_7 = arith.constant 0 : index
    %8 = vector.load %arg6[%c0_6, %c0_7] : memref<1x16xf32, #tpu.memory_space<vmem>>, vector<1x16xf32>
    tpu.vector_store %arg6[%c0_6, %c0_7], %7 {strides = array<i32>} : memref<1x16xf32, #tpu.memory_space<vmem>>, vector<1x16xf32>,
    %c0_i32_8 = arith.constant 0 : i32
    %9 = arith.cmpi eq, %arg1, %c0_i32_8 : i32
    %10 = arith.extui %9 : i1 to i32
    %c0_i32_9 = arith.constant 0 : i32
    %11 = arith.cmpi ne, %10, %c0_i32_9 : i32
    scf.if %11 {
      %c0_10 = arith.constant 0 : index
      %c0_11 = arith.constant 0 : index
      %12 = vector.load %arg6[%c0_10, %c0_11] : memref<1x16xf32, #tpu.memory_space<vmem>>, vector<1x16xf32>
      %c0_12 = arith.constant 0 : index
      %c0_13 = arith.constant 0 : index
      %13 = memref.load %arg4[%c0_12, %c0_13] : memref<1x1xf32, #tpu.memory_space<smem>>
      %14 = vector.broadcast %13 : f32 to vector<1x16xf32>
      %15 = arith.addf %12, %14 : vector<1x16xf32>
      %c0_14 = arith.constant 0 : index
      %c0_15 = arith.constant 0 : index
      %c0_16 = arith.constant 0 : index
      %16 = vector.load %arg5[%c0_14, %c0_15, %c0_16] : memref<1x1x16xf32, #tpu.memory_space<vmem>>, vector<1x1x16xf32>
      %17 = vector.shape_cast %16 : vector<1x1x16xf32> to vector<1x16xf32>
      %18 = vector.shape_cast %15 : vector<1x16xf32> to vector<1x1x16xf32>
      tpu.vector_store %arg5[%c0_14, %c0_15, %c0_16], %18 {strides = array<i32>} : memref<1x1x16xf32, #tpu.memory_space<vmem>>, vector<1x1x16xf32>,
    } else {
    }
    return
  }
  func.func @transform_0(%arg0: i32, %arg1: i32) -> (i32, i32) {
    %c0_i32 = arith.constant 0 : i32
    return %arg0, %arg1 : i32, i32
  }
  func.func @transform_1(%arg0: i32, %arg1: i32) -> (i32, i32) {
    %c0_i32 = arith.constant 0 : i32
    %c0_i32_0 = arith.constant 0 : i32
    return %c0_i32, %arg1 : i32, i32
  }
  func.func @transform_2(%arg0: i32, %arg1: i32) -> (i32, i32) {
    %c0_i32 = arith.constant 0 : i32
    %c0_i32_0 = arith.constant 0 : i32
    %c0_i32_1 = arith.constant 0 : i32
    return %c0_i32, %c0_i32_0 : i32, i32
  }
  func.func @transform_3(%arg0: i32, %arg1: i32) -> (i32, i32, i32) {
    %c0_i32 = arith.constant 0 : i32
    %c0_i32_0 = arith.constant 0 : i32
    %c0_i32_1 = arith.constant 0 : i32
    return %arg0, %c0_i32, %c0_i32_0 : i32, i32, i32
  }
}

</mosaic_0001>

<llo_original>
// kernel: tpu_custom_call.1
$region0: #{tpu_custom_call.1}
  #allocation0 [shape = 'u32[]', space=smem, size = 0x4, offset = 0x4, fixed_abs, tag = 'smem constant byte address 0x4 - core index']
  #allocation1 [shape = 'u32[72,128]{1,0:T(1,128)}', space=vmem, size = 0x9000, scoped, tag = 'internal scratch']
  #allocation2 [shape = 'f32[1,16]{1,0:T(1,128)}', space=vmem, size = 0x200, scoped, tag = 'scratch operand']
  #allocation3 [shape = 'f32[1,1]{1,0:T(1,128)S(6)}', space=smem, size = 0x200, scoped, tag = 'scoped memory for tpu_custom_call.1']
  %s0 = inlined_call_operand.vmem [shape: f32[64,32], index: 0, kind: input, shape index: {}]
  %s1 = inlined_call_operand.vmem [shape: f32[1,32], index: 1, kind: input, shape index: {}]
  %s2 = inlined_call_operand.<no memory space> [shape: f32[1,1], index: 2, kind: input, shape index: {}]
  %s3 = inlined_call_operand.hbm [shape: f32[4,1,16], index: 3, kind: output, shape index: {}]
  %s4 = sld [smem:[#allocation0]]
  $region53: #{tpu_custom_call.1} parent=0
    _
  %s6 = ssub.s32 1, %s4
  %s7 = scalar_select 0, %s6, %s4
  %8 = sst [smem:[#allocation3]] %s2
  $region1: #{tpu_custom_call.1} parent=0
    #allocation4 [shape = 'u8[1024]{0}', space=vmem, size = 0x400, scoped, tag = 'output window, operand 0']
    #allocation5 [shape = 's32[2]{0}', space=sflag, size = 0x8, scoped, tag = 'scoped memory for tpu_custom_call.1']
    %9 = vsyncpa [#allocation5], 0
    %s10 = scalar_lea.sflag [#allocation5], 1
    %11 = vsyncpa %s10, 0
    loop: start=0, step=1, limit=6
    $region2: #{tpu_custom_call.1} parent=1 // loop_pre_header
      _
    $region3: #{tpu_custom_call.1} parent=1 // loop_header
      %s13 = sphi 0, %s17
      %p14 = scmp.ge.s32.totalorder %s13, 6
      %s20 = sphi 0, %s32
      %s21 = sphi 0, %s28
      %s22 = sphi 0, %s20
      %s23 = sphi 0, %s21
      %s24 = sphi 0, %s22
      %s25 = sphi 0, %s23
      %s37 = sphi 0, %s39
      %s40 = sphi 0, %s37
      %s41 = sphi 0, %s40
      %s57 = sphi 0, %s41
      %s63 = sphi 0, %s65
      %s66 = sphi 0, %s63
      %s67 = sphi 0, %s66
      %s83 = sphi 0, %s67
      %s87 = sphi 0, %s87
      %s89 = sphi 0, %s87
      %s90 = sphi 0, %s89
      %s104 = sphi 0, %s90
      %s110 = sphi 0, %s112
      %s113 = sphi 0, %s110
      %s114 = sphi 0, %s113
      %s130 = sphi 0, %s114
    $region4: #{tpu_custom_call.1} parent=1 // loop_header_branch
      %16 = sbr.rel (%p14) target = $region8
    $region5: #{tpu_custom_call.1} parent=1 // loop_body
      %s18 = ssub.s32 %s13, 1
      %s19 = ssub.s32 %s13, 2
      %s26 = sadd.s32 1, %s21
      %p27 = scmp.ge.s32.totalorder %s26, 1
      %s28 = scalar_select %p27, 0, %s26
      %s29 = sadd.s32 1, %s20
      %s30 = scalar_select %p27, %s29, %s20
      %p31 = scmp.ge.s32.totalorder %s30, 4
      %s32 = scalar_select %p31, 0, %s30
      %s33 = ssub.s32 %s20, %s32
      %s34 = ssub.s32 %s21, %s28
      %s35 = sor.u32 %s33, %s34
      %p36 = scmp.eq.s32.totalorder %s35, 0
      %s38 = sadd.s32 %s37, 1
      %s39 = scalar_select %p36, %s37, %s38
      %p42 = pneg %p36
      %p43 = scmp.eq.s32.totalorder %s13, 3
      %p44 = por %p42, %p43
      %p45 = scmp.ne.s32.totalorder %s37, %s40
      %p46 = scmp.eq.s32.totalorder %s13, 0
      %p47 = por %p45, %p46
      %p48 = scmp.ne.s32.totalorder %s37, %s40
      %p49 = scmp.eq.s32.totalorder %s18, 3
      %p50 = por %p48, %p49
      %p51 = scmp.ne.s32.totalorder %s40, %s41
      %p52 = scmp.eq.s32.totalorder %s18, 0
      %p53 = por %p51, %p52
      %p54 = scmp.ne.s32.totalorder %s40, %s41
      %p55 = scmp.eq.s32.totalorder %s19, 3
      %p56 = por %p54, %p55
      %p58 = scmp.ne.s32.totalorder %s41, %s57
      %p59 = scmp.eq.s32.totalorder %s19, 0
      %p60 = por %p58, %p59
      %s61 = ssub.s32 %s21, %s28
      %p62 = scmp.eq.s32.totalorder %s61, 0
      %s64 = sadd.s32 %s63, 1
      %s65 = scalar_select %p62, %s63, %s64
      %p68 = pneg %p62
      %p69 = scmp.eq.s32.totalorder %s13, 3
      %p70 = por %p68, %p69
      %p71 = scmp.ne.s32.totalorder %s63, %s66
      %p72 = scmp.eq.s32.totalorder %s13, 0
      %p73 = por %p71, %p72
      %p74 = scmp.ne.s32.totalorder %s63, %s66
      %p75 = scmp.eq.s32.totalorder %s18, 3
      %p76 = por %p74, %p75
      %p77 = scmp.ne.s32.totalorder %s66, %s67
      %p78 = scmp.eq.s32.totalorder %s18, 0
      %p79 = por %p77, %p78
      %p80 = scmp.ne.s32.totalorder %s66, %s67
      %p81 = scmp.eq.s32.totalorder %s19, 3
      %p82 = por %p80, %p81
      %p84 = scmp.ne.s32.totalorder %s67, %s83
      %p85 = scmp.eq.s32.totalorder %s19, 0
      %p86 = por %p84, %p85
      %s88 = sadd.s32 %s87, 1
      %p91 = scmp.eq.s32.totalorder %s13, 3
      %p92 = scmp.ne.s32.totalorder %s87, %s89
      %p93 = scmp.eq.s32.totalorder %s13, 0
      %p94 = por %p92, %p93
      %p95 = scmp.ne.s32.totalorder %s87, %s89
      %p96 = scmp.eq.s32.totalorder %s18, 3
      %p97 = por %p95, %p96
      %p98 = scmp.ne.s32.totalorder %s89, %s90
      %p99 = scmp.eq.s32.totalorder %s18, 0
      %p100 = por %p98, %p99
      %p101 = scmp.ne.s32.totalorder %s89, %s90
      %p102 = scmp.eq.s32.totalorder %s19, 3
      %p103 = por %p101, %p102
      %p105 = scmp.ne.s32.totalorder %s90, %s104
      %p106 = scmp.eq.s32.totalorder %s19, 0
      %p107 = por %p105, %p106
      %s108 = ssub.s32 %s20, %s32
      %p109 = scmp.eq.s32.totalorder %s108, 0
      %s111 = sadd.s32 %s110, 1
      %s112 = scalar_select %p109, %s110, %s111
      %p115 = pneg %p109
      %p116 = scmp.eq.s32.totalorder %s13, 3
      %p117 = por %p115, %p116
      %p118 = scmp.ne.s32.totalorder %s110, %s113
      %p119 = scmp.eq.s32.totalorder %s13, 0
      %p120 = por %p118, %p119
      %p121 = scmp.ne.s32.totalorder %s110, %s113
      %p122 = scmp.eq.s32.totalorder %s18, 3
      %p123 = por %p121, %p122
      %p124 = scmp.ne.s32.totalorder %s113, %s114
      %p125 = scmp.eq.s32.totalorder %s18, 0
      %p126 = por %p124, %p125
      %p127 = scmp.ne.s32.totalorder %s113, %s114
      %p128 = scmp.eq.s32.totalorder %s19, 3
      %p129 = por %p127, %p128
      %p131 = scmp.ne.s32.totalorder %s114, %s130
      %p132 = scmp.eq.s32.totalorder %s19, 0
      %p133 = por %p131, %p132
      %p134 = scmp.le.s32.totalorder 1, %s13
      %p135 = scmp.lt.s32.totalorder %s13, 5
      %p136 = pnand %p134, %p135
      %p137 = pneg %p136
      // Predicated region
      $region9: #{tpu_custom_call.1} parent=5 // pred_check
        _
      $region10: #{tpu_custom_call.1} parent=5 // pred_check_branch
        %139 = sbr.rel (%p136) target = $region12
      $region11: #{tpu_custom_call.1} parent=5 // pred_region
        %s140 = ssub.s32 %s13, 1
        // Predicated region
        $region13: #{tpu_custom_call.1} parent=11 // pred_check
          %p141 = pneg %p79
        $region14: #{tpu_custom_call.1} parent=11 // pred_check_branch
          %143 = sbr.rel (%p141) target = $region16
        $region15: #{tpu_custom_call.1} parent=11 // pred_region
          %p144 = scmp.lt.s32.totalorder %s23, 0
          %s145 = scalar_select %p144, %s23, 0
          %s146 = scalar_lea.vmem %s1, %s145
        $region16: #{tpu_custom_call.1} parent=11 // pred_fallthru
          _
        // Predicated region
        $region17: #{tpu_custom_call.1} parent=11 // pred_check
          %p147 = pneg %p100
        $region18: #{tpu_custom_call.1} parent=11 // pred_check_branch
          %149 = sbr.rel (%p147) target = $region20
        $region19: #{tpu_custom_call.1} parent=11 // pred_region
          _
        $region20: #{tpu_custom_call.1} parent=11 // pred_fallthru
          _
      $region12: #{tpu_custom_call.1} parent=5 // pred_fallthru
        _
      %p150 = scmp.lt.s32.totalorder %s13, 4
      // Predicated region
      $region21: #{tpu_custom_call.1} parent=5 // pred_check
        %p151 = pneg %p150
      $region22: #{tpu_custom_call.1} parent=5 // pred_check_branch
        %153 = sbr.rel (%p151) target = $region24
      $region23: #{tpu_custom_call.1} parent=5 // pred_region
        // Predicated region
        $region25: #{tpu_custom_call.1} parent=23 // pred_check
          %p154 = pneg %p47
        $region26: #{tpu_custom_call.1} parent=23 // pred_check_branch
          %156 = sbr.rel (%p154) target = $region28
        $region27: #{tpu_custom_call.1} parent=23 // pred_region
          %s157 = smul.u32 2, %s20
          %p158 = scmp.lt.s32.totalorder %s157, 7
          %s159 = scalar_select %p158, %s157, 7
          %p160 = scmp.lt.s32.totalorder %s21, 0
          %s161 = scalar_select %p160, %s21, 0
          %s162 = sadd.s32 %s161, %s159
          %s163 = smul.addr %s162, 8
          %s164 = scalar_lea.vmem %s0, %s163
          %s165 = smul.u32 2, %s20
        $region28: #{tpu_custom_call.1} parent=23 // pred_fallthru
          _
      $region24: #{tpu_custom_call.1} parent=5 // pred_fallthru
        _
      %p166 = scmp.le.s32.totalorder 1, %s13
      %p167 = scmp.lt.s32.totalorder %s13, 5
      %p168 = pnand %p166, %p167
      %p169 = pneg %p168
      // Predicated region
      $region29: #{tpu_custom_call.1} parent=5 // pred_check
        _
      $region30: #{tpu_custom_call.1} parent=5 // pred_check_branch
        %171 = sbr.rel (%p168) target = $region32
      $region31: #{tpu_custom_call.1} parent=5 // pred_region
        %s172 = ssub.s32 %s13, 1
        %s173 = smul.u32 2, %s22
        %p174 = scmp.lt.s32.totalorder %s173, 7
        %s175 = scalar_select %p174, %s173, 7
        %p176 = scmp.lt.s32.totalorder %s23, 0
        %s177 = scalar_select %p176, %s23, 0
        %s178 = sadd.s32 %s177, %s175
        %s179 = smul.addr %s178, 8
        %s180 = scalar_lea.vmem %s0, %s179
        %p181 = pneg %p53
        %p182 = pneg %p50
        %p183 = scmp.lt.s32.totalorder %s23, 0
        %s184 = scalar_select %p183, %s23, 0
        %s185 = scalar_lea.vmem %s1, %s184
        %p186 = pneg %p79
        %p187 = pneg %p76
        %p188 = pneg %p100
        %p189 = pneg %p97
        %p190 = pneg %p126
        %p191 = pneg %p123
        %s192 = sand.u32 %s113, 1
        %s193 = scalar_lea.sflag [#allocation5], %s192
        %s194 = sand.u32 %s113, 1
        %s195 = scalar_lea.vmem [#allocation4], %s194
        %s196 = smul.u32 2, %s22
        %p197 = scmp.lt.s32.totalorder %s196, 7
        %s198 = scalar_select %p197, %s196, 7
        %p199 = scmp.lt.s32.totalorder %s23, 0
        %s200 = scalar_select %p199, %s23, 0
        %s201 = sadd.s32 %s200, %s198
        %s202 = smul.addr %s201, 8
        %s203 = scalar_lea.vmem %s0, %s202
        %s204 = smul.u32 2, %s22
        %p205 = scmp.lt.s32.totalorder %s23, 0
        %s206 = scalar_select %p205, %s23, 0
        %s207 = scalar_lea.vmem %s1, %s206
        %p208 = scmp.eq.s32.totalorder %s23, 0
        // Predicated region
        $region33: #{tpu_custom_call.1} parent=31 // pred_check
          %p209 = pneg %p208
        $region34: #{tpu_custom_call.1} parent=31 // pred_check_branch
          %211 = sbr.rel (%p209) target = $region36
        $region35: #{tpu_custom_call.1} parent=31 // pred_region
          %vm212 = vcmask 122880
          %213 = vst.msk [vmem:[#allocation2] sm:$0x1] %vm212, 0.0
        $region36: #{tpu_custom_call.1} parent=31 // pred_fallthru
          _
        %v214 = vld [vmem:[%s203] sm:$0xff]
        %v215 = vld [vmem:[%s203 + $0x8] sm:$0xff]
        %v216 = vld [vmem:[#allocation2] sm:$0x1]
        %v217 = vld [vmem:[%s207] sm:$0x1]
        %vm218 = vcmask 261120
        %v220 = vsel %vm218, %v217, 0
        %v223 = vsel %vm218, %v214, 0
        %v226 = vsel %vm218, %v215, 0
        %228 = vmatpush.xpose.msra.mxu0 0.0
        %229 = vmatpush.xpose.msra.mxu0 0.0
        %230 = vmatpush.xpose.msra.mxu0 0.0
        %231 = vmatpush.xpose.msra.mxu0 0.0
        %232 = vmatpush.xpose.msra.mxu0 0.0
        %233 = vmatpush.xpose.msra.mxu0 0.0
        %234 = vmatpush.xpose.msra.mxu0 0.0
        %235 = vmatpush.xpose.msra.mxu0 0.0
        %236 = vmatpush.xpose.msra.mxu0 0.0
        %237 = vmatpush.xpose.msra.mxu0 0.0
        %238 = vmatpush.xpose.msra.mxu0 0.0
        %239 = vmatpush.xpose.msra.mxu0 0.0
        %240 = vmatpush.xpose.msra.mxu0 0.0
        %241 = vmatpush.xpose.msra.mxu0 0.0
        %242 = vmatpush.xpose.msra.mxu0 %v226
        %243 = vmatpush.xpose.msra.mxu0 %v223
        %244 = vmatmul.f32.gmra.mxu0 %v220
        %v245 = vpop.f32.mrf.mxu0
        %v246 = vadd.f32 0.0, %v245
        %247 = vdwg.mxu0
        %v248 = vadd.f32 %v216, %v246
        %vm249 = vcmask 122880
        %250 = vst.msk [vmem:[#allocation2] sm:$0x1] %vm249, %v248
        // Predicated region
        $region37: #{tpu_custom_call.1} parent=31 // pred_check
          %p251 = pneg %p208
        $region38: #{tpu_custom_call.1} parent=31 // pred_check_branch
          %253 = sbr.rel (%p251) target = $region40
        $region39: #{tpu_custom_call.1} parent=31 // pred_region
          %v254 = vld [vmem:[#allocation2] sm:$0x1]
          %s255 = sld [smem:[#allocation3]]
          %v256 = vstv %s255
          %v257 = vadd.f32 %v254, %v256
          %258 = vst.msk [vmem:[%s195] sm:$0x1] %vm249, %v257
        $region40: #{tpu_custom_call.1} parent=31 // pred_fallthru
          _
        %s259 = sand.u32 %s113, 1
        %s260 = scalar_lea.sflag [#allocation5], %s259
        %s261 = sand.u32 %s113, 1
        %s262 = scalar_lea.vmem [#allocation4], %s261
        // Predicated region
        $region41: #{tpu_custom_call.1} parent=31 // pred_check
          %p263 = pneg %p123
        $region42: #{tpu_custom_call.1} parent=31 // pred_check_branch
          %265 = sbr.rel (%p263) target = $region44
        $region43: #{tpu_custom_call.1} parent=31 // pred_region
          %267 = vsyncadd %s260, 0
          %s268 = scalar_lea.hbm %s3, %s22
          %s270 = sshll.u32 %s262, 4
          %s271 = int_to_ptr.vmem [resolvable:$true] %s270
          %s272 = sshll.u32 %s268, 4
          %s273 = int_to_ptr.hbm [resolvable:$true] %s272
          %275 = dma.vmem_to_hbm [thread:$0]  %s271, 16, %s273, %s260
        $region44: #{tpu_custom_call.1} parent=31 // pred_fallthru
          _
      $region32: #{tpu_custom_call.1} parent=5 // pred_fallthru
        _
      %p276 = scmp.le.s32.totalorder 2, %s13
      // Predicated region
      $region45: #{tpu_custom_call.1} parent=5 // pred_check
        %p277 = pneg %p276
      $region46: #{tpu_custom_call.1} parent=5 // pred_check_branch
        %279 = sbr.rel (%p277) target = $region48
      $region47: #{tpu_custom_call.1} parent=5 // pred_region
        %s280 = ssub.s32 %s13, 2
        // Predicated region
        $region49: #{tpu_custom_call.1} parent=47 // pred_check
          %p281 = pneg %p129
        $region50: #{tpu_custom_call.1} parent=47 // pred_check_branch
          %283 = sbr.rel (%p281) target = $region52
        $region51: #{tpu_custom_call.1} parent=47 // pred_region
          %s284 = sand.u32 %s114, 1
          %s285 = scalar_lea.sflag [#allocation5], %s284
          %s286 = sand.u32 %s114, 1
          %s287 = scalar_lea.vmem [#allocation4], %s286
          %289 = dma.done %s285, 16
        $region52: #{tpu_custom_call.1} parent=47 // pred_fallthru
          _
      $region48: #{tpu_custom_call.1} parent=5 // pred_fallthru
        _
    $region6: #{tpu_custom_call.1} parent=1 // loop_footer
      %s17 = sadd.s32 1, %s13
    $region7: #{tpu_custom_call.1} parent=1 // loop_footer_branch
      %12 = sbr.rel target = $region3
    $region8: #{tpu_custom_call.1} parent=1 // loop_exit
      _
    %290 = vsyncpa [#allocation5], 1
    %s291 = scalar_lea.sflag [#allocation5], 1
    %292 = vsyncpa %s291, 1

</llo_original>
